<compile_context>
chip_gen: v5e
topology: v5e:2x2
jax: 0.10.0
libtpu: 0.0.40
codegen_flags: <defaults>
</compile_context>

<pallas_src>
import math

import jax
import jax.numpy as jnp
from jax.experimental import pallas as pl
from jax.experimental.pallas import tpu as pltpu


def _make_kernel(C, C_out, L, tile_n):
    # Static roll shifts (roll(x, s)[:, j] == x[:, (j - s) % tile_n]).
    s_m1 = 1 % tile_n                    # -> x[:, j-1]
    s_p1 = (tile_n - 1) % tile_n         # -> x[:, j+1]
    s_wm = (tile_n - (L - 1)) % tile_n   # -> x[:, j+(L-1)]  (wrap for l == 0)
    s_wp = (L - 1) % tile_n              # -> x[:, j-(L-1)]  (wrap for l == L-1)

    def kernel(lpos_ref, x_ref, w_ref, o_ref, taps_ref):
        # lpos_ref : (1, tile_n)  int32 position-within-batch (resident)
        # x_ref    : (C, tile_n)  activations, whole batches per tile
        # w_ref    : (C_out, 3*C) pool-absorbed conv weights (resident)
        # o_ref    : (C_out, tile_n)
        # taps_ref : (3*C, tile_n) VMEM scratch for the stacked taps
        x = x_ref[...]

        r_m1 = pltpu.roll(x, s_m1, 1)
        r_p1 = pltpu.roll(x, s_p1, 1)
        w_m1 = pltpu.roll(x, s_wm, 1)
        w_p1 = pltpu.roll(x, s_wp, 1)

        lpos = jnp.broadcast_to(lpos_ref[...], x.shape)
        first = lpos == 0
        last = lpos == (L - 1)

        # Assemble taps with plain stores into scratch (no concatenate copy);
        # keep a single K = 3*C MXU push.
        taps_ref[0:C, :] = jnp.where(first, w_m1, r_m1)          # t=0 : x_{l-1}
        taps_ref[C:2 * C, :] = x                                  # t=1 : x_l
        taps_ref[2 * C:3 * C, :] = jnp.where(last, w_p1, r_p1)    # t=2 : x_{l+1}

        acc = jnp.dot(w_ref[...], taps_ref[...],
                      preferred_element_type=jnp.float32)
        o_ref[...] = acc.astype(o_ref.dtype)

    return kernel


def _plan_tiles(B, C, C_out, L, comp_isz, out_isz,
                vmem_budget_bytes, max_tile_cols):
    """Pick batches-per-tile so every tile is 128-lane aligned and fits VMEM."""
    # Smallest batch group whose lane width (m0 * L) is a multiple of 128.
    m0 = 128 // math.gcd(L, 128)
    cols_per_group = m0 * L
    # Per-column VMEM bytes: double-buffered x block + taps scratch +
    # double-buffered out block + f32 accumulator temp.
    bytes_per_col = (2 * C + 3 * C) * comp_isz + 2 * C_out * out_isz + C_out * 4
    budget_cols = max(cols_per_group, vmem_budget_bytes // bytes_per_col)
    target_cols = max(cols_per_group, min(budget_cols, max_tile_cols))

    groups_total = -(-B // m0)                               # ceil(B / m0)
    mult = max(1, min(target_cols // cols_per_group, groups_total))
    num_tiles = -(-groups_total // mult)
    mult = -(-groups_total // num_tiles)                     # rebalance -> min padding
    bpb = m0 * mult                                          # batches per tile
    return bpb, num_tiles


def moving_avg1_pallas(x, w, kernel_size, *, compute_dtype=None,
                       vmem_budget_bytes=10 * 1024 * 1024, max_tile_cols=2048):
    """x: (B, c_in, L); w: (c_in, c_in - kernel_size + 1, 3). Returns (B, c_in, L)."""
    B, C, L = x.shape
    C_out, Cp, KW = w.shape
    assert KW == 3 and Cp == C - kernel_size + 1

    out_dtype = x.dtype
    comp_dtype = jnp.dtype(compute_dtype) if compute_dtype is not None else jnp.dtype(x.dtype)

    # ---- one-time parameter transform (outside the kernel) ----
    # Absorb the channel-axis AvgPool (pool[p, c] = 1/k for c in [p, p+k)) into
    # the conv weights, then flatten the 3 taps -> (C_out, 3*C), order [t0|t1|t2].
    f32 = jnp.float32
    cp_idx = jnp.arange(Cp, dtype=jnp.int32)[:, None]
    c_idx = jnp.arange(C, dtype=jnp.int32)[None, :]
    pool = ((c_idx >= cp_idx) & (c_idx < cp_idx + kernel_size)).astype(f32) / kernel_size
    w_flat = jnp.einsum("opt,pc->otc", w.astype(f32), pool).reshape(C_out, 3 * C)
    w_flat = w_flat.astype(comp_dtype)

    # ---- tile plan: whole batches per tile, 128-aligned lane width ----
    bpb, num_tiles = _plan_tiles(B, C, C_out, L,
                                 jnp.dtype(comp_dtype).itemsize,
                                 jnp.dtype(out_dtype).itemsize,
                                 vmem_budget_bytes, max_tile_cols)
    tile_n = bpb * L                 # multiple of 128 by construction
    B_pad = num_tiles * bpb

    # ---- layout plumbing: lane-dense (C, B_pad*L), batch-major columns ----
    # TODO(synk): in a full model keep this (C, B*L) layout across adjacent ops
    # (or fuse the relayout into neighbouring XLA ops) instead of round-tripping
    # HBM with these transposes.
    x2d = jnp.transpose(x, (1, 0, 2)).reshape(C, B * L).astype(comp_dtype)
    if B_pad != B:
        x2d = jnp.pad(x2d, ((0, 0), (0, (B_pad - B) * L)))

    # Position-within-batch row; identical for every tile -> stays resident.
    lpos = (jnp.arange(tile_n, dtype=jnp.int32) % L)[None, :]

    kernel = _make_kernel(C, C_out, L, tile_n)

    out2d = pl.pallas_call(
        kernel,
        out_shape=jax.ShapeDtypeStruct((C_out, B_pad * L), out_dtype),
        grid_spec=pltpu.PrefetchScalarGridSpec(
            num_scalar_prefetch=0,
            grid=(num_tiles,),
            in_specs=[
                pl.BlockSpec((1, tile_n), lambda g: (0, 0)),       # lpos (resident)
                pl.BlockSpec((C, tile_n), lambda g: (0, g)),       # activation tile
                pl.BlockSpec((C_out, 3 * C), lambda g: (0, 0)),    # weights (resident)
            ],
            out_specs=pl.BlockSpec((C_out, tile_n), lambda g: (0, g)),
            scratch_shapes=[pltpu.VMEM((3 * C, tile_n), comp_dtype)],
        ),
        compiler_params=pltpu.CompilerParams(
            dimension_semantics=("parallel",),
            # Working set is budgeted to ~10 MiB/tile; 32 MiB scoped VMEM gives
            # headroom and fits v5e (128 MiB), v6e (128 MiB) and v7x (64 MiB).
            vmem_limit_bytes=32 * 1024 * 1024,
        ),
    )(lpos, x2d, w_flat)

    # Back to the PyTorch layout (B, C_out, L); drop the padded batches.
    out = jnp.transpose(out2d.reshape(C_out, B_pad, L), (1, 0, 2))
    return out[:B]


def moving_avg1_ref(x, w, kernel_size):
    """Pure-JAX reference mirroring the PyTorch forward."""
    B, C, L = x.shape
    Cp = C - kernel_size + 1
    # AvgPool1d along the channel axis (stride=1, padding=0)
    y = jnp.mean(
        jnp.stack([x[:, k:k + Cp, :] for k in range(kernel_size)], axis=0),
        axis=0)                                                      # (B, Cp, L)
    # Circular padding of 1 along L, then valid conv with kernel 3
    ypad = jnp.concatenate([y[:, :, -1:], y, y[:, :, :1]], axis=-1)  # (B, Cp, L+2)
    out = jax.lax.conv_general_dilated(
        ypad, w, window_strides=(1,), padding="VALID",
        dimension_numbers=("NCH", "OIH", "NCH"))
    return out


if __name__ == "__main__":
    kernel_size = 3

    def run_case(B, c_in, L, compute_dtype=None, atol=1e-4, rtol=1e-4):
        key = jax.random.PRNGKey(0)
        kx, kw = jax.random.split(key)
        x = jax.random.normal(kx, (B, c_in, L), dtype=jnp.float32)
        conv_w = (jax.random.normal(kw, (c_in, c_in - kernel_size + 1, 3),
                                    dtype=jnp.float32)
                  / jnp.sqrt(3.0 * (c_in - kernel_size + 1)))
        out = jax.block_until_ready(
            moving_avg1_pallas(x, conv_w, kernel_size,
                               compute_dtype=compute_dtype))
        ref = moving_avg1_ref(x, conv_w, kernel_size)
        assert out.shape == (B, c_in, L)
        assert jnp.allclose(out, ref, atol=atol, rtol=rtol), (
            f"mismatch B={B} c_in={c_in} L={L} compute_dtype={compute_dtype}")

    # Small module-sized case (B*L < 128 -> padded to one 128-lane tile).
    run_case(B=2, c_in=16, L=32)
    # Multi-tile parallel grid (3 tiles of 1536 lanes), batch padding, L not a
    # power of two -> exercises the resident lpos wrap fix across tiles.
    run_case(B=90, c_in=16, L=48)
    # bf16 matmul operands / f32 accumulation (halves HBM bytes, HBM-bound op).
    run_case(B=2, c_in=16, L=32, compute_dtype=jnp.bfloat16,
             atol=3e-2, rtol=3e-2)

    print("KERNEL_OK")
</pallas_src>

<mosaic_0001>
module attributes {stable_mosaic.version = 11 : i64} {
  func.func @kernel(%arg0: i32, %arg1: memref<1x128xi32, #tpu.memory_space<vmem>>, %arg2: memref<16x128xf32, #tpu.memory_space<vmem>>, %arg3: memref<16x48xf32, #tpu.memory_space<vmem>>, %arg4: memref<16x128xf32, #tpu.memory_space<vmem>>, %arg5: memref<48x128xf32, #tpu.memory_space<vmem>>) attributes {dimension_semantics = [#tpu.dimension_semantics<parallel>], iteration_bounds = array<i64: 1>, scalar_prefetch = 0 : i64, scratch_operands = 1 : i64, tpu.core_type = #tpu.core_type<tc>, window_params = [{pipeline_mode = #tpu.pipeline_mode<synchronous>, transform_indices = @transform_0, window_bounds = array<i64: 1, 128>}, {transform_indices = @transform_1, window_bounds = array<i64: 16, 128>}, {pipeline_mode = #tpu.pipeline_mode<synchronous>, transform_indices = @transform_2, window_bounds = array<i64: 16, 48>}, {transform_indices = @transform_3, window_bounds = array<i64: 16, 128>}]} {
    %c0 = arith.constant 0 : index
    %c0_0 = arith.constant 0 : index
    %0 = vector.load %arg2[%c0, %c0_0] : memref<16x128xf32, #tpu.memory_space<vmem>>, vector<16x128xf32>
    %c1_i32 = arith.constant 1 : i32
    %1 = tpu.dynamic_rotate %0 by %c1_i32 dim 1 : vector<16x128xf32>, i32 -> vector<16x128xf32>
    %c127_i32 = arith.constant 127 : i32
    %2 = tpu.dynamic_rotate %0 by %c127_i32 dim 1 : vector<16x128xf32>, i32 -> vector<16x128xf32>
    %c97_i32 = arith.constant 97 : i32
    %3 = tpu.dynamic_rotate %0 by %c97_i32 dim 1 : vector<16x128xf32>, i32 -> vector<16x128xf32>
    %c31_i32 = arith.constant 31 : i32
    %4 = tpu.dynamic_rotate %0 by %c31_i32 dim 1 : vector<16x128xf32>, i32 -> vector<16x128xf32>
    %c0_1 = arith.constant 0 : index
    %c0_2 = arith.constant 0 : index
    %5 = vector.load %arg1[%c0_1, %c0_2] : memref<1x128xi32, #tpu.memory_space<vmem>>, vector<1x128xi32>
    %6 = vector.shape_cast %5 : vector<1x128xi32> to vector<1x128xi32>
    %7 = vector.broadcast %6 : vector<1x128xi32> to vector<16x128xi32>
    %c0_i32 = arith.constant 0 : i32
    %8 = vector.broadcast %c0_i32 : i32 to vector<16x128xi32>
    %9 = arith.cmpi eq, %7, %8 : vector<16x128xi32>
    %c31_i32_3 = arith.constant 31 : i32
    %10 = vector.broadcast %c31_i32_3 : i32 to vector<16x128xi32>
    %11 = arith.cmpi eq, %7, %10 : vector<16x128xi32>
    %12 = arith.select %9, %3, %1 : vector<16x128xi1>, vector<16x128xf32>
    %c0_4 = arith.constant 0 : index
    %c0_5 = arith.constant 0 : index
    %13 = vector.load %arg5[%c0_4, %c0_5] : memref<48x128xf32, #tpu.memory_space<vmem>>, vector<16x128xf32>
    tpu.vector_store %arg5[%c0_4, %c0_5], %12 {strides = array<i32>} : memref<48x128xf32, #tpu.memory_space<vmem>>, vector<16x128xf32>,
    %c16 = arith.constant 16 : index
    %c0_6 = arith.constant 0 : index
    %14 = vector.load %arg5[%c16, %c0_6] : memref<48x128xf32, #tpu.memory_space<vmem>>, vector<16x128xf32>
    tpu.vector_store %arg5[%c16, %c0_6], %0 {strides = array<i32>} : memref<48x128xf32, #tpu.memory_space<vmem>>, vector<16x128xf32>,
    %15 = arith.select %11, %4, %2 : vector<16x128xi1>, vector<16x128xf32>
    %c32 = arith.constant 32 : index
    %c0_7 = arith.constant 0 : index
    %16 = vector.load %arg5[%c32, %c0_7] : memref<48x128xf32, #tpu.memory_space<vmem>>, vector<16x128xf32>
    tpu.vector_store %arg5[%c32, %c0_7], %15 {strides = array<i32>} : memref<48x128xf32, #tpu.memory_space<vmem>>, vector<16x128xf32>,
    %c0_8 = arith.constant 0 : index
    %c0_9 = arith.constant 0 : index
    %17 = vector.load %arg3[%c0_8, %c0_9] : memref<16x48xf32, #tpu.memory_space<vmem>>, vector<16x48xf32>
    %c0_10 = arith.constant 0 : index
    %c0_11 = arith.constant 0 : index
    %18 = vector.load %arg5[%c0_10, %c0_11] : memref<48x128xf32, #tpu.memory_space<vmem>>, vector<48x128xf32>
    %cst = arith.constant dense<0.000000e+00> : vector<16x128xf32>
    %19 = tpu.matmul %17, %18, %cst {dimension_numbers = #tpu.dot_dimension_numbers<[1], [0], [0], [1], [0, 0, 1, 1], [], []>} : vector<16x48xf32>, vector<48x128xf32>, vector<16x128xf32> -> vector<16x128xf32>
    %c0_12 = arith.constant 0 : index
    %c0_13 = arith.constant 0 : index
    %20 = vector.load %arg4[%c0_12, %c0_13] : memref<16x128xf32, #tpu.memory_space<vmem>>, vector<16x128xf32>
    tpu.vector_store %arg4[%c0_12, %c0_13], %19 {strides = array<i32>} : memref<16x128xf32, #tpu.memory_space<vmem>>, vector<16x128xf32>,
    return
  }
  func.func @transform_0(%arg0: i32) -> (i32, i32) {
    %c0_i32 = arith.constant 0 : i32
    %c0_i32_0 = arith.constant 0 : i32
    %c0_i32_1 = arith.constant 0 : i32
    return %c0_i32, %c0_i32_0 : i32, i32
  }
  func.func @transform_1(%arg0: i32) -> (i32, i32) {
    %c0_i32 = arith.constant 0 : i32
    %c0_i32_0 = arith.constant 0 : i32
    return %c0_i32, %arg0 : i32, i32
  }
  func.func @transform_2(%arg0: i32) -> (i32, i32) {
    %c0_i32 = arith.constant 0 : i32
    %c0_i32_0 = arith.constant 0 : i32
    %c0_i32_1 = arith.constant 0 : i32
    return %c0_i32, %c0_i32_0 : i32, i32
  }
  func.func @transform_3(%arg0: i32) -> (i32, i32) {
    %c0_i32 = arith.constant 0 : i32
    %c0_i32_0 = arith.constant 0 : i32
    return %c0_i32, %arg0 : i32, i32
  }
}

</mosaic_0001>

<llo_original>
// kernel: tpu_custom_call.1
$region0: #{tpu_custom_call.1}
  #allocation0 [shape = 'u32[]', space=smem, size = 0x4, offset = 0x4, fixed_abs, tag = 'smem constant byte address 0x4 - core index']
  #allocation1 [shape = 'u32[72,128]{1,0:T(1,128)}', space=vmem, size = 0x9000, scoped, tag = 'internal scratch']
  #allocation2 [shape = 'f32[48,128]{1,0:T(8,128)}', space=vmem, size = 0x6000, scoped, tag = 'scratch operand']
  %s0 = inlined_call_operand.hbm [shape: s32[1,128], index: 0, kind: input, shape index: {}]
  %s1 = inlined_call_operand.hbm [shape: f32[16,128], index: 1, kind: input, shape index: {}]
  %s2 = inlined_call_operand.hbm [shape: f32[16,48], index: 2, kind: input, shape index: {}]
  %s3 = inlined_call_operand.hbm [shape: f32[16,128], index: 3, kind: output, shape index: {}]
  %s4 = sld [smem:[#allocation0]]
  $region34: #{tpu_custom_call.1} parent=0
    _
  %s6 = ssub.s32 1, %s4
  %s7 = scalar_select 0, %s6, %s4
  $region1: #{tpu_custom_call.1} parent=0
    #allocation3 [shape = 'u8[512]{0}', space=vmem, size = 0x400, scoped, tag = 'input window, operand 0, single buffered']
    #allocation4 [shape = 's32[1]{0}', space=sflag, size = 0x4, scoped, tag = 'scoped memory for tpu_custom_call.1']
    #allocation5 [shape = 's32[1]{0}', space=sflag, size = 0x4, scoped, tag = 'scoped memory for tpu_custom_call.1']
    #allocation6 [shape = 'u8[8192]{0}', space=vmem, size = 0x2000, scoped, tag = 'input window, operand 1, single buffered']
    #allocation7 [shape = 's32[1]{0}', space=sflag, size = 0x4, scoped, tag = 'scoped memory for tpu_custom_call.1']
    #allocation8 [shape = 'u8[8192]{0}', space=vmem, size = 0x2000, scoped, tag = 'input window, operand 2, single buffered']
    #allocation9 [shape = 'u8[8192]{0}', space=vmem, size = 0x2000, scoped, tag = 'output window, operand 0, single buffered']
    %8 = vsyncpa [#allocation4], 0
    %9 = vsyncpa [#allocation7], 0
    %10 = vsyncpa [#allocation5], 0
    // Predicated region
    $region2: #{tpu_custom_call.1} parent=1 // pred_check
      _
    $region3: #{tpu_custom_call.1} parent=1 // pred_check_branch
      %12 = sbr.rel (0) target = $region5
    $region4: #{tpu_custom_call.1} parent=1 // pred_region
      %14 = vsyncadd [#allocation4], 0
      %s16 = sshll.u32 %s0, 4
      %s17 = int_to_ptr.hbm [resolvable:$true] %s16
      %s18 = sshll.u32 [#allocation3], 4
      %s19 = int_to_ptr.vmem [resolvable:$true] %s18
      %21 = dma.hbm_to_vmem [thread:$0]  %s17, 16, %s19, [#allocation4]
    $region5: #{tpu_custom_call.1} parent=1 // pred_fallthru
      _
    // Predicated region
    $region6: #{tpu_custom_call.1} parent=1 // pred_check
      _
    $region7: #{tpu_custom_call.1} parent=1 // pred_check_branch
      %23 = sbr.rel (0) target = $region9
    $region8: #{tpu_custom_call.1} parent=1 // pred_region
      %25 = vsyncadd [#allocation7], 0
      %s26 = sshll.u32 %s1, 4
      %s27 = int_to_ptr.hbm [resolvable:$true] %s26
      %s28 = sshll.u32 [#allocation6], 4
      %s29 = int_to_ptr.vmem [resolvable:$true] %s28
      %34 = dma.hbm_to_vmem [thread:$0]  %s27, 256, %s29, [#allocation7], 128, 128, 8
    $region9: #{tpu_custom_call.1} parent=1 // pred_fallthru
      _
    // Predicated region
    $region10: #{tpu_custom_call.1} parent=1 // pred_check
      _
    $region11: #{tpu_custom_call.1} parent=1 // pred_check_branch
      %36 = sbr.rel (0) target = $region13
    $region12: #{tpu_custom_call.1} parent=1 // pred_region
      %38 = vsyncadd [#allocation7], 0
      %s39 = sshll.u32 %s2, 4
      %s40 = int_to_ptr.hbm [resolvable:$true] %s39
      %s41 = sshll.u32 [#allocation8], 4
      %s42 = int_to_ptr.vmem [resolvable:$true] %s41
      %47 = dma.hbm_to_vmem [thread:$0]  %s40, 256, %s42, [#allocation7], 128, 128, 8
    $region13: #{tpu_custom_call.1} parent=1 // pred_fallthru
      _
    // Predicated region
    $region14: #{tpu_custom_call.1} parent=1 // pred_check
      _
    $region15: #{tpu_custom_call.1} parent=1 // pred_check_branch
      %49 = sbr.rel (0) target = $region17
    $region16: #{tpu_custom_call.1} parent=1 // pred_region
      %51 = dma.done [#allocation4], 16
    $region17: #{tpu_custom_call.1} parent=1 // pred_fallthru
      _
    // Predicated region
    $region18: #{tpu_custom_call.1} parent=1 // pred_check
      _
    $region19: #{tpu_custom_call.1} parent=1 // pred_check_branch
      %53 = sbr.rel (0) target = $region21
    $region20: #{tpu_custom_call.1} parent=1 // pred_region
      %55 = dma.done [#allocation7], 256
    $region21: #{tpu_custom_call.1} parent=1 // pred_fallthru
      _
    // Predicated region
    $region22: #{tpu_custom_call.1} parent=1 // pred_check
      _
    $region23: #{tpu_custom_call.1} parent=1 // pred_check_branch
      %57 = sbr.rel (0) target = $region25
    $region24: #{tpu_custom_call.1} parent=1 // pred_region
      %59 = dma.done [#allocation7], 256
    $region25: #{tpu_custom_call.1} parent=1 // pred_fallthru
      _
    %v60 = vld [vmem:[#allocation6] sm:$0xff]
    %v61 = vld [vmem:[#allocation6 + $0x8] sm:$0xff]
    %62 = vrot.lane.b32.xlu0 %v60, 1
    %v63 = vpop.permute.xlu0 %62
    %64 = vrot.lane.b32.xlu0 %v61, 1
    %v65 = vpop.permute.xlu0 %64
    %66 = vrot.lane.b32.xlu0 %v60, 127
    %v67 = vpop.permute.xlu0 %66
    %68 = vrot.lane.b32.xlu0 %v61, 127
    %v69 = vpop.permute.xlu0 %68
    %70 = vrot.lane.b32.xlu0 %v60, 97
    %v71 = vpop.permute.xlu0 %70
    %72 = vrot.lane.b32.xlu0 %v61, 97
    %v73 = vpop.permute.xlu0 %72
    %74 = vrot.lane.b32.xlu0 %v60, 31
    %v75 = vpop.permute.xlu0 %74
    %76 = vrot.lane.b32.xlu0 %v61, 31
    %v77 = vpop.permute.xlu0 %76
    %v78 = vld [vmem:[#allocation3] sm:$0x1]
    %v79 = vperm.slane %v78, 0
    %vm80 = vcmp.eq.s32.totalorder %v79, 0
    %vm81 = vcmp.eq.s32.totalorder %v79, 31
    %v82 = vsel %vm80, %v71, %v63
    %v83 = vsel %vm80, %v73, %v65
    %84 = vst [vmem:[#allocation2] sm:$0xff] %v82
    %85 = vst [vmem:[#allocation2 + $0x8] sm:$0xff] %v83
    %86 = vst [vmem:[#allocation2 + $0x10] sm:$0xff] %v60
    %87 = vst [vmem:[#allocation2 + $0x18] sm:$0xff] %v61
    %v88 = vsel %vm81, %v75, %v67
    %v89 = vsel %vm81, %v77, %v69
    %90 = vst [vmem:[#allocation2 + $0x20] sm:$0xff] %v88
    %91 = vst [vmem:[#allocation2 + $0x28] sm:$0xff] %v89
    %v92 = vld [vmem:[#allocation8] sm:$0xff]
    %v93 = vld [vmem:[#allocation8 + $0x8] sm:$0xff]
    %v94 = vld [vmem:[#allocation2] sm:$0xff]
    %v95 = vld [vmem:[#allocation2 + $0x8] sm:$0xff]
    %v96 = vld [vmem:[#allocation2 + $0x10] sm:$0xff]
    %v97 = vld [vmem:[#allocation2 + $0x18] sm:$0xff]
    %v98 = vld [vmem:[#allocation2 + $0x20] sm:$0xff]
    %v99 = vld [vmem:[#allocation2 + $0x28] sm:$0xff]
    %vm100 = vcmask 392192
    %v102 = vsel %vm100, %v92, 0
    %v105 = vsel %vm100, %v93, 0
    %107 = vmatpush.msra.mxu0 0.0
    %108 = vmatpush.msra.mxu0 0.0
    %109 = vmatpush.msra.mxu0 0.0
    %110 = vmatpush.msra.mxu0 0.0
    %111 = vmatpush.msra.mxu0 0.0
    %112 = vmatpush.msra.mxu0 0.0
    %113 = vmatpush.msra.mxu0 0.0
    %114 = vmatpush.msra.mxu0 0.0
    %115 = vmatpush.msra.mxu0 0.0
    %116 = vmatpush.msra.mxu0 0.0
    %117 = vmatpush.msra.mxu0 %v99
    %118 = vmatpush.msra.mxu0 %v98
    %119 = vmatpush.msra.mxu0 %v97
    %120 = vmatpush.msra.mxu0 %v96
    %121 = vmatpush.msra.mxu0 %v95
    %122 = vmatpush.msra.mxu0 %v94
    %123 = vmatmul.f32.gmra.mxu0 %v102
    %v124 = vpop.f32.mrf.mxu0
    %v125 = vadd.f32 0.0, %v124
    %126 = vmatmul.f32.gmra.mxu0 %v105
    %v127 = vpop.f32.mrf.mxu0
    %v128 = vadd.f32 0.0, %v127
    %129 = vdwg.mxu0
    %130 = vst [vmem:[#allocation9] sm:$0xff] %v125
    %131 = vst [vmem:[#allocation9 + $0x8] sm:$0xff] %v128
    // Predicated region
    $region26: #{tpu_custom_call.1} parent=1 // pred_check
      _
    $region27: #{tpu_custom_call.1} parent=1 // pred_check_branch
      %133 = sbr.rel (0) target = $region29
    $region28: #{tpu_custom_call.1} parent=1 // pred_region
      %135 = vsyncadd [#allocation5], 0
      %s136 = sshll.u32 [#allocation9], 4
      %s137 = int_to_ptr.vmem [resolvable:$true] %s136
      %s138 = sshll.u32 %s3, 4
      %s139 = int_to_ptr.hbm [resolvable:$true] %s138
      %144 = dma.vmem_to_hbm [thread:$0]  %s137, 256, %s139, [#allocation5], 128, 128, 8
    $region29: #{tpu_custom_call.1} parent=1 // pred_fallthru
      _
    // Predicated region
    $region30: #{tpu_custom_call.1} parent=1 // pred_check
      _
    $region31: #{tpu_custom_call.1} parent=1 // pred_check_branch
      %146 = sbr.rel (0) target = $region33
    $region32: #{tpu_custom_call.1} parent=1 // pred_region
      %148 = dma.done [#allocation5], 256
    $region33: #{tpu_custom_call.1} parent=1 // pred_fallthru
      _
    %149 = vsyncpa [#allocation4], 1
    %150 = vsyncpa [#allocation7], 1
    %151 = vsyncpa [#allocation5], 1

</llo_original>
